<compile_context>
chip_gen: v5e
topology: v5e:2x2
jax: 0.10.0
libtpu: 0.0.40
codegen_flags: <defaults>
</compile_context>

<pallas_src>
import jax
import jax.numpy as jnp
from jax.experimental import pallas as pl
from jax.experimental.pallas import tpu as pltpu

C_IN = 4      # input channels to conv1d_first
C_MID = 4     # conv1d_first output channels
C_OUT = 12    # conv1d output channels
HIDDEN = 32   # synthetic "pretrained" encoder width (= proj.in_features)


def _fused_kernel(x_ref, wf_t_ref, bf_ref, wp_ref, bp_ref, o_ref):
    # x_ref:   (1, C_IN, TILE_T)  NCW tile, tokens lane-dense
    # wf_t_ref:(HIDDEN, C_IN)     folded (conv1 @ conv2 @ encoder) weight, transposed
    # bf_ref:  (HIDDEN, 1)        folded bias (per hidden unit)
    # wp_ref:  (HIDDEN, 1)        proj weight
    # bp_ref:  (1, 1)             proj bias
    # o_ref:   (1, 1, TILE_T)     lane-dense output tile
    x = x_ref[0]  # (C_IN, TILE_T)

    # Single folded affine (4 -> 32) on the MXU, f32 accumulation, then tanh (EUP).
    h = jnp.tanh(
        jnp.dot(wf_t_ref[...], x, preferred_element_type=jnp.float32)
        + bf_ref[...]
    )  # (HIDDEN, TILE_T)

    # Head proj (HIDDEN -> 1): broadcast-multiply on the VPU + sublane reduce on
    # the XLU; keeps the store lane-dense instead of an N=1 MXU matmul.
    o_ref[0] = jnp.sum(h * wp_ref[...], axis=0, keepdims=True) + bp_ref[0, 0]


def _pick_tile_t(t):
    """Largest token-tile (multiple of 128, <= 8192) that divides padded T."""
    for cand in (8192, 4096, 2048, 1024, 512, 256, 128):
        if t >= cand and t % cand == 0:
            return cand
    return 128  # caller pads T up to a multiple of 128


def fine_tuned_wav2vec2_forward(source, params):
    """source: (B, 4, T) float32, NCW like the PyTorch Conv1d input."""
    B, C, T = source.shape
    assert C == C_IN

    (w1, b1, w2, b2, we, be, wp, bp) = params

    # Offline fold of conv1d_first -> conv1d -> encoder linear (all affine):
    #   pre_tanh = x @ (w1 @ w2 @ we) + ((b1 @ w2 + b2) @ we + be)
    wf_t = (w1 @ w2 @ we).T            # (HIDDEN, C_IN)
    bf = ((b1 @ w2 + b2) @ we + be).T  # (HIDDEN, 1)
    bp2 = bp.reshape(1, 1)

    tile_t = _pick_tile_t(T)
    t_pad = pl.cdiv(T, tile_t) * tile_t
    x = source
    if t_pad != T:
        # Pad the token axis so every tile is full; tail is sliced off below.
        x = jnp.pad(source, ((0, 0), (0, 0), (0, t_pad - T)))

    grid = (B, t_pad // tile_t)

    def full_block(shape):
        return pl.BlockSpec(shape, lambda b, t: (0,) * len(shape))

    out = pl.pallas_call(
        _fused_kernel,
        out_shape=jax.ShapeDtypeStruct((B, 1, t_pad), jnp.float32),
        grid=grid,
        in_specs=[
            pl.BlockSpec((1, C_IN, tile_t), lambda b, t: (b, 0, t)),  # x (NCW)
            full_block((HIDDEN, C_IN)),                               # wf_t
            full_block((HIDDEN, 1)),                                  # bf
            full_block((HIDDEN, 1)),                                  # wp
            full_block((1, 1)),                                       # bp
        ],
        out_specs=pl.BlockSpec((1, 1, tile_t), lambda b, t: (b, 0, t)),
        compiler_params=pltpu.CompilerParams(
            dimension_semantics=("parallel", "parallel"),
        ),
    )(x, wf_t, bf, wp, bp2)

    # (B, 1, T_pad) -> (B, T, 1); middle dim is 1 so this is metadata-only
    # glue (plus a slice if the token axis was padded).
    return out[:, :, :T].reshape(B, T, 1)


def make_params(key):
    """Deterministic parameter init matching the module's layer shapes.

    PyTorch stores Conv1d weight as (C_out, C_in, 1) and Linear weight as
    (out, in); we keep them transposed to (in, out) so folding is plain
    left-to-right matmuls.
    """
    keys = jax.random.split(key, 8)
    scale = 0.1
    w1 = scale * jax.random.normal(keys[0], (C_IN, C_MID), jnp.float32)
    b1 = scale * jax.random.normal(keys[1], (1, C_MID), jnp.float32)
    w2 = scale * jax.random.normal(keys[2], (C_MID, C_OUT), jnp.float32)
    b2 = scale * jax.random.normal(keys[3], (1, C_OUT), jnp.float32)
    we = scale * jax.random.normal(keys[4], (C_OUT, HIDDEN), jnp.float32)
    be = scale * jax.random.normal(keys[5], (1, HIDDEN), jnp.float32)
    wp = scale * jax.random.normal(keys[6], (HIDDEN, 1), jnp.float32)
    bp = scale * jax.random.normal(keys[7], (1, 1), jnp.float32)
    return (w1, b1, w2, b2, we, be, wp, bp)


def _reference(source, params):
    """Pure-JAX reference of the UNFUSED computation (sanity check of the fold)."""
    (w1, b1, w2, b2, we, be, wp, bp) = params
    B, C, T = source.shape
    x = jnp.transpose(source, (0, 2, 1)).reshape(B * T, C)
    h1 = x @ w1 + b1
    h2 = h1 @ w2 + b2
    h3 = jnp.tanh(h2 @ we + be)
    out = h3 @ wp + bp
    return out.reshape(B, T, 1)


if __name__ == "__main__":
    key = jax.random.PRNGKey(0)
    k_in, k_par = jax.random.split(key)

    B, T = 2, 1024  # small demo shape; T a multiple of 128 -> zero-copy path
    source = jax.random.normal(k_in, (B, C_IN, T), jnp.float32)
    params = make_params(k_par)

    out = fine_tuned_wav2vec2_forward(source, params)
    out = jax.block_until_ready(out)

    ref = _reference(source, params)
    assert out.shape == (B, T, 1)
    assert jnp.allclose(out, ref, atol=1e-5, rtol=1e-5), "mismatch vs reference"

    print("KERNEL_OK")
</pallas_src>

<mosaic_0001>
module attributes {stable_mosaic.version = 11 : i64} {
  func.func @_fused_kernel(%arg0: i32, %arg1: i32, %arg2: memref<1x4x1024xf32, #tpu.memory_space<vmem>>, %arg3: memref<32x4xf32, #tpu.memory_space<vmem>>, %arg4: memref<32x1xf32, #tpu.memory_space<vmem>>, %arg5: memref<32x1xf32, #tpu.memory_space<vmem>>, %arg6: memref<1x1xf32, #tpu.memory_space<vmem>>, %arg7: memref<1x1x1024xf32, #tpu.memory_space<vmem>>) attributes {dimension_semantics = [#tpu.dimension_semantics<parallel>, #tpu.dimension_semantics<parallel>], iteration_bounds = array<i64: 2, 1>, scalar_prefetch = 0 : i64, scratch_operands = 0 : i64, tpu.core_type = #tpu.core_type<tc>, window_params = [{transform_indices = @transform_0, window_bounds = array<i64: 1, 4, 1024>}, {pipeline_mode = #tpu.pipeline_mode<synchronous>, transform_indices = @transform_1, window_bounds = array<i64: 32, 4>}, {pipeline_mode = #tpu.pipeline_mode<synchronous>, transform_indices = @transform_2, window_bounds = array<i64: 32, 1>}, {pipeline_mode = #tpu.pipeline_mode<synchronous>, transform_indices = @transform_3, window_bounds = array<i64: 32, 1>}, {pipeline_mode = #tpu.pipeline_mode<synchronous>, transform_indices = @transform_4, window_bounds = array<i64: 1, 1>}, {transform_indices = @transform_5, window_bounds = array<i64: 1, 1, 1024>}]} {
    %c0 = arith.constant 0 : index
    %c0_0 = arith.constant 0 : index
    %c0_1 = arith.constant 0 : index
    %0 = vector.load %arg2[%c0, %c0_0, %c0_1] : memref<1x4x1024xf32, #tpu.memory_space<vmem>>, vector<1x4x1024xf32>
    %1 = vector.shape_cast %0 : vector<1x4x1024xf32> to vector<4x1024xf32>
    %c0_2 = arith.constant 0 : index
    %c0_3 = arith.constant 0 : index
    %2 = vector.load %arg3[%c0_2, %c0_3] : memref<32x4xf32, #tpu.memory_space<vmem>>, vector<32x4xf32>
    %cst = arith.constant dense<0.000000e+00> : vector<32x1024xf32>
    %3 = tpu.matmul %2, %1, %cst {dimension_numbers = #tpu.dot_dimension_numbers<[1], [0], [0], [1], [0, 0, 1, 1], [], []>} : vector<32x4xf32>, vector<4x1024xf32>, vector<32x1024xf32> -> vector<32x1024xf32>
    %c0_4 = arith.constant 0 : index
    %c0_5 = arith.constant 0 : index
    %4 = vector.load %arg4[%c0_4, %c0_5] : memref<32x1xf32, #tpu.memory_space<vmem>>, vector<32x1xf32>
    %5 = vector.broadcast %4 : vector<32x1xf32> to vector<32x1024xf32>
    %6 = arith.addf %3, %5 : vector<32x1024xf32>
    %7 = math.tanh %6 : vector<32x1024xf32>
    %c0_6 = arith.constant 0 : index
    %c0_7 = arith.constant 0 : index
    %8 = vector.load %arg5[%c0_6, %c0_7] : memref<32x1xf32, #tpu.memory_space<vmem>>, vector<32x1xf32>
    %9 = vector.broadcast %8 : vector<32x1xf32> to vector<32x1024xf32>
    %10 = arith.mulf %7, %9 : vector<32x1024xf32>
    %cst_8 = arith.constant dense<0.000000e+00> : vector<1024xf32>
    %11 = vector.multi_reduction <add>, %10, %cst_8 [0] : vector<32x1024xf32> to vector<1024xf32>
    %12 = vector.shape_cast %11 : vector<1024xf32> to vector<1x1024xf32>
    %c0_9 = arith.constant 0 : index
    %c0_10 = arith.constant 0 : index
    %13 = vector.load %arg6[%c0_9, %c0_10] : memref<1x1xf32, #tpu.memory_space<vmem>>, vector<1x1xf32>
    %14 = vector.extract %13[0, 0] : f32 from vector<1x1xf32>
    %15 = vector.broadcast %14 : f32 to vector<1x1024xf32>
    %16 = arith.addf %12, %15 : vector<1x1024xf32>
    %c0_11 = arith.constant 0 : index
    %c0_12 = arith.constant 0 : index
    %c0_13 = arith.constant 0 : index
    %17 = vector.load %arg7[%c0_11, %c0_12, %c0_13] : memref<1x1x1024xf32, #tpu.memory_space<vmem>>, vector<1x1x1024xf32>
    %18 = vector.shape_cast %17 : vector<1x1x1024xf32> to vector<1x1024xf32>
    %19 = vector.shape_cast %16 : vector<1x1024xf32> to vector<1x1x1024xf32>
    tpu.vector_store %arg7[%c0_11, %c0_12, %c0_13], %19 {strides = array<i32>} : memref<1x1x1024xf32, #tpu.memory_space<vmem>>, vector<1x1x1024xf32>,
    return
  }
  func.func @transform_0(%arg0: i32, %arg1: i32) -> (i32, i32, i32) {
    %c0_i32 = arith.constant 0 : i32
    %c0_i32_0 = arith.constant 0 : i32
    return %arg0, %c0_i32, %arg1 : i32, i32, i32
  }
  func.func @transform_1(%arg0: i32, %arg1: i32) -> (i32, i32) {
    %c0_i32 = arith.constant 0 : i32
    %c0_i32_0 = arith.constant 0 : i32
    %c0_i32_1 = arith.constant 0 : i32
    return %c0_i32, %c0_i32_0 : i32, i32
  }
  func.func @transform_2(%arg0: i32, %arg1: i32) -> (i32, i32) {
    %c0_i32 = arith.constant 0 : i32
    %c0_i32_0 = arith.constant 0 : i32
    %c0_i32_1 = arith.constant 0 : i32
    return %c0_i32, %c0_i32_0 : i32, i32
  }
  func.func @transform_3(%arg0: i32, %arg1: i32) -> (i32, i32) {
    %c0_i32 = arith.constant 0 : i32
    %c0_i32_0 = arith.constant 0 : i32
    %c0_i32_1 = arith.constant 0 : i32
    return %c0_i32, %c0_i32_0 : i32, i32
  }
  func.func @transform_4(%arg0: i32, %arg1: i32) -> (i32, i32) {
    %c0_i32 = arith.constant 0 : i32
    %c0_i32_0 = arith.constant 0 : i32
    %c0_i32_1 = arith.constant 0 : i32
    return %c0_i32, %c0_i32_0 : i32, i32
  }
  func.func @transform_5(%arg0: i32, %arg1: i32) -> (i32, i32, i32) {
    %c0_i32 = arith.constant 0 : i32
    %c0_i32_0 = arith.constant 0 : i32
    return %arg0, %c0_i32, %arg1 : i32, i32, i32
  }
}

</mosaic_0001>

<llo_original>
// kernel: tpu_custom_call.1
$region0: #{tpu_custom_call.1}
  #allocation0 [shape = 'u32[]', space=smem, size = 0x4, offset = 0x4, fixed_abs, tag = 'smem constant byte address 0x4 - core index']
  #allocation1 [shape = 'u32[72,128]{1,0:T(1,128)}', space=vmem, size = 0x9000, scoped, tag = 'internal scratch']
  #allocation2 [shape = 'f32[1,1]{1,0:T(1,128)S(1)}', space=vmem, size = 0x200, scoped, tag = 'scoped memory for tpu_custom_call.1']
  %s0 = inlined_call_operand.vmem [shape: f32[2,4,1024], index: 0, kind: input, shape index: {}]
  %s1 = inlined_call_operand.vmem [shape: f32[32,4], index: 1, kind: input, shape index: {}]
  %s2 = inlined_call_operand.vmem [shape: f32[32,1], index: 2, kind: input, shape index: {}]
  %s3 = inlined_call_operand.vmem [shape: f32[32,1], index: 3, kind: input, shape index: {}]
  %s4 = inlined_call_operand.<no memory space> [shape: f32[1,1], index: 4, kind: input, shape index: {}]
  %s5 = inlined_call_operand.hbm [shape: f32[2,1,1024], index: 5, kind: output, shape index: {}]
  %s6 = sld [smem:[#allocation0]]
  $region53: #{tpu_custom_call.1} parent=0
    _
  %s8 = ssub.s32 1, %s6
  %s9 = scalar_select 0, %s8, %s6
  %v10 = vstv %s4
  %11 = vst [vmem:[#allocation2] sm:$0x1] %v10
  $region1: #{tpu_custom_call.1} parent=0
    #allocation3 [shape = 'u8[8192]{0}', space=vmem, size = 0x2000, scoped, tag = 'output window, operand 0']
    #allocation4 [shape = 's32[2]{0}', space=sflag, size = 0x8, scoped, tag = 'scoped memory for tpu_custom_call.1']
    %12 = vsyncpa [#allocation4], 0
    %s13 = scalar_lea.sflag [#allocation4], 1
    %14 = vsyncpa %s13, 0
    loop: start=0, step=1, limit=4
    $region2: #{tpu_custom_call.1} parent=1 // loop_pre_header
      _
    $region3: #{tpu_custom_call.1} parent=1 // loop_header
      %s16 = sphi 0, %s20
      %p17 = scmp.ge.s32.totalorder %s16, 4
      %s23 = sphi 0, %s35
      %s24 = sphi 0, %s31
      %s25 = sphi 0, %s23
      %s26 = sphi 0, %s24
      %s27 = sphi 0, %s25
      %s28 = sphi 0, %s26
      %s40 = sphi 0, %s42
      %s43 = sphi 0, %s40
      %s44 = sphi 0, %s43
      %s60 = sphi 0, %s44
      %s64 = sphi 0, %s64
      %s66 = sphi 0, %s64
      %s67 = sphi 0, %s66
      %s81 = sphi 0, %s67
      %s85 = sphi 0, %s85
      %s87 = sphi 0, %s85
      %s88 = sphi 0, %s87
      %s102 = sphi 0, %s88
      %s106 = sphi 0, %s106
      %s108 = sphi 0, %s106
      %s109 = sphi 0, %s108
      %s123 = sphi 0, %s109
      %s127 = sphi 0, %s127
      %s129 = sphi 0, %s127
      %s130 = sphi 0, %s129
      %s144 = sphi 0, %s130
      %s152 = sphi 0, %s154
      %s155 = sphi 0, %s152
      %s156 = sphi 0, %s155
      %s172 = sphi 0, %s156
    $region4: #{tpu_custom_call.1} parent=1 // loop_header_branch
      %19 = sbr.rel (%p17) target = $region8
    $region5: #{tpu_custom_call.1} parent=1 // loop_body
      %s21 = ssub.s32 %s16, 1
      %s22 = ssub.s32 %s16, 2
      %s29 = sadd.s32 1, %s24
      %p30 = scmp.ge.s32.totalorder %s29, 1
      %s31 = scalar_select %p30, 0, %s29
      %s32 = sadd.s32 1, %s23
      %s33 = scalar_select %p30, %s32, %s23
      %p34 = scmp.ge.s32.totalorder %s33, 2
      %s35 = scalar_select %p34, 0, %s33
      %s36 = ssub.s32 %s23, %s35
      %s37 = ssub.s32 %s24, %s31
      %s38 = sor.u32 %s36, %s37
      %p39 = scmp.eq.s32.totalorder %s38, 0
      %s41 = sadd.s32 %s40, 1
      %s42 = scalar_select %p39, %s40, %s41
      %p45 = pneg %p39
      %p46 = scmp.eq.s32.totalorder %s16, 1
      %p47 = por %p45, %p46
      %p48 = scmp.ne.s32.totalorder %s40, %s43
      %p49 = scmp.eq.s32.totalorder %s16, 0
      %p50 = por %p48, %p49
      %p51 = scmp.ne.s32.totalorder %s40, %s43
      %p52 = scmp.eq.s32.totalorder %s21, 1
      %p53 = por %p51, %p52
      %p54 = scmp.ne.s32.totalorder %s43, %s44
      %p55 = scmp.eq.s32.totalorder %s21, 0
      %p56 = por %p54, %p55
      %p57 = scmp.ne.s32.totalorder %s43, %s44
      %p58 = scmp.eq.s32.totalorder %s22, 1
      %p59 = por %p57, %p58
      %p61 = scmp.ne.s32.totalorder %s44, %s60
      %p62 = scmp.eq.s32.totalorder %s22, 0
      %p63 = por %p61, %p62
      %s65 = sadd.s32 %s64, 1
      %p68 = scmp.eq.s32.totalorder %s16, 1
      %p69 = scmp.ne.s32.totalorder %s64, %s66
      %p70 = scmp.eq.s32.totalorder %s16, 0
      %p71 = por %p69, %p70
      %p72 = scmp.ne.s32.totalorder %s64, %s66
      %p73 = scmp.eq.s32.totalorder %s21, 1
      %p74 = por %p72, %p73
      %p75 = scmp.ne.s32.totalorder %s66, %s67
      %p76 = scmp.eq.s32.totalorder %s21, 0
      %p77 = por %p75, %p76
      %p78 = scmp.ne.s32.totalorder %s66, %s67
      %p79 = scmp.eq.s32.totalorder %s22, 1
      %p80 = por %p78, %p79
      %p82 = scmp.ne.s32.totalorder %s67, %s81
      %p83 = scmp.eq.s32.totalorder %s22, 0
      %p84 = por %p82, %p83
      %s86 = sadd.s32 %s85, 1
      %p89 = scmp.eq.s32.totalorder %s16, 1
      %p90 = scmp.ne.s32.totalorder %s85, %s87
      %p91 = scmp.eq.s32.totalorder %s16, 0
      %p92 = por %p90, %p91
      %p93 = scmp.ne.s32.totalorder %s85, %s87
      %p94 = scmp.eq.s32.totalorder %s21, 1
      %p95 = por %p93, %p94
      %p96 = scmp.ne.s32.totalorder %s87, %s88
      %p97 = scmp.eq.s32.totalorder %s21, 0
      %p98 = por %p96, %p97
      %p99 = scmp.ne.s32.totalorder %s87, %s88
      %p100 = scmp.eq.s32.totalorder %s22, 1
      %p101 = por %p99, %p100
      %p103 = scmp.ne.s32.totalorder %s88, %s102
      %p104 = scmp.eq.s32.totalorder %s22, 0
      %p105 = por %p103, %p104
      %s107 = sadd.s32 %s106, 1
      %p110 = scmp.eq.s32.totalorder %s16, 1
      %p111 = scmp.ne.s32.totalorder %s106, %s108
      %p112 = scmp.eq.s32.totalorder %s16, 0
      %p113 = por %p111, %p112
      %p114 = scmp.ne.s32.totalorder %s106, %s108
      %p115 = scmp.eq.s32.totalorder %s21, 1
      %p116 = por %p114, %p115
      %p117 = scmp.ne.s32.totalorder %s108, %s109
      %p118 = scmp.eq.s32.totalorder %s21, 0
      %p119 = por %p117, %p118
      %p120 = scmp.ne.s32.totalorder %s108, %s109
      %p121 = scmp.eq.s32.totalorder %s22, 1
      %p122 = por %p120, %p121
      %p124 = scmp.ne.s32.totalorder %s109, %s123
      %p125 = scmp.eq.s32.totalorder %s22, 0
      %p126 = por %p124, %p125
      %s128 = sadd.s32 %s127, 1
      %p131 = scmp.eq.s32.totalorder %s16, 1
      %p132 = scmp.ne.s32.totalorder %s127, %s129
      %p133 = scmp.eq.s32.totalorder %s16, 0
      %p134 = por %p132, %p133
      %p135 = scmp.ne.s32.totalorder %s127, %s129
      %p136 = scmp.eq.s32.totalorder %s21, 1
      %p137 = por %p135, %p136
      %p138 = scmp.ne.s32.totalorder %s129, %s130
      %p139 = scmp.eq.s32.totalorder %s21, 0
      %p140 = por %p138, %p139
      %p141 = scmp.ne.s32.totalorder %s129, %s130
      %p142 = scmp.eq.s32.totalorder %s22, 1
      %p143 = por %p141, %p142
      %p145 = scmp.ne.s32.totalorder %s130, %s144
      %p146 = scmp.eq.s32.totalorder %s22, 0
      %p147 = por %p145, %p146
      %s148 = ssub.s32 %s23, %s35
      %s149 = ssub.s32 %s24, %s31
      %s150 = sor.u32 %s148, %s149
      %p151 = scmp.eq.s32.totalorder %s150, 0
      %s153 = sadd.s32 %s152, 1
      %s154 = scalar_select %p151, %s152, %s153
      %p157 = pneg %p151
      %p158 = scmp.eq.s32.totalorder %s16, 1
      %p159 = por %p157, %p158
      %p160 = scmp.ne.s32.totalorder %s152, %s155
      %p161 = scmp.eq.s32.totalorder %s16, 0
      %p162 = por %p160, %p161
      %p163 = scmp.ne.s32.totalorder %s152, %s155
      %p164 = scmp.eq.s32.totalorder %s21, 1
      %p165 = por %p163, %p164
      %p166 = scmp.ne.s32.totalorder %s155, %s156
      %p167 = scmp.eq.s32.totalorder %s21, 0
      %p168 = por %p166, %p167
      %p169 = scmp.ne.s32.totalorder %s155, %s156
      %p170 = scmp.eq.s32.totalorder %s22, 1
      %p171 = por %p169, %p170
      %p173 = scmp.ne.s32.totalorder %s156, %s172
      %p174 = scmp.eq.s32.totalorder %s22, 0
      %p175 = por %p173, %p174
      %p176 = scmp.le.s32.totalorder 1, %s16
      %p177 = scmp.lt.s32.totalorder %s16, 3
      %p178 = pnand %p176, %p177
      %p179 = pneg %p178
      // Predicated region
      $region9: #{tpu_custom_call.1} parent=5 // pred_check
        _
      $region10: #{tpu_custom_call.1} parent=5 // pred_check_branch
        %181 = sbr.rel (%p178) target = $region12
      $region11: #{tpu_custom_call.1} parent=5 // pred_region
        %s182 = ssub.s32 %s16, 1
        // Predicated region
        $region13: #{tpu_custom_call.1} parent=11 // pred_check
          %p183 = pneg %p77
        $region14: #{tpu_custom_call.1} parent=11 // pred_check_branch
          %185 = sbr.rel (%p183) target = $region16
        $region15: #{tpu_custom_call.1} parent=11 // pred_region
          _
        $region16: #{tpu_custom_call.1} parent=11 // pred_fallthru
          _
        // Predicated region
        $region17: #{tpu_custom_call.1} parent=11 // pred_check
          %p186 = pneg %p98
        $region18: #{tpu_custom_call.1} parent=11 // pred_check_branch
          %188 = sbr.rel (%p186) target = $region20
        $region19: #{tpu_custom_call.1} parent=11 // pred_region
          _
        $region20: #{tpu_custom_call.1} parent=11 // pred_fallthru
          _
        // Predicated region
        $region21: #{tpu_custom_call.1} parent=11 // pred_check
          %p189 = pneg %p119
        $region22: #{tpu_custom_call.1} parent=11 // pred_check_branch
          %191 = sbr.rel (%p189) target = $region24
        $region23: #{tpu_custom_call.1} parent=11 // pred_region
          _
        $region24: #{tpu_custom_call.1} parent=11 // pred_fallthru
          _
        // Predicated region
        $region25: #{tpu_custom_call.1} parent=11 // pred_check
          %p192 = pneg %p140
        $region26: #{tpu_custom_call.1} parent=11 // pred_check_branch
          %194 = sbr.rel (%p192) target = $region28
        $region27: #{tpu_custom_call.1} parent=11 // pred_region
          _
        $region28: #{tpu_custom_call.1} parent=11 // pred_fallthru
          _
      $region12: #{tpu_custom_call.1} parent=5 // pred_fallthru
        _
      %p195 = scmp.lt.s32.totalorder %s16, 2
      // Predicated region
      $region29: #{tpu_custom_call.1} parent=5 // pred_check
        %p196 = pneg %p195
      $region30: #{tpu_custom_call.1} parent=5 // pred_check_branch
        %198 = sbr.rel (%p196) target = $region32
      $region31: #{tpu_custom_call.1} parent=5 // pred_region
        // Predicated region
        $region33: #{tpu_custom_call.1} parent=31 // pred_check
          %p199 = pneg %p50
        $region34: #{tpu_custom_call.1} parent=31 // pred_check_branch
          %201 = sbr.rel (%p199) target = $region36
        $region35: #{tpu_custom_call.1} parent=31 // pred_region
          %s202 = smul.u32 8, %s24
          %p203 = scmp.lt.s32.totalorder %s23, 1
          %s204 = scalar_select %p203, %s23, 1
          %p205 = scmp.lt.s32.totalorder %s202, 7
          %s206 = scalar_select %p205, %s202, 7
          %s207 = smul.addr %s204, 8
          %s208 = sadd.s32 %s206, %s207
          %s209 = smul.addr %s208, 4
          %s210 = scalar_lea.vmem %s0, %s209
          %s211 = smul.u32 8, %s24
        $region36: #{tpu_custom_call.1} parent=31 // pred_fallthru
          _
      $region32: #{tpu_custom_call.1} parent=5 // pred_fallthru
        _
      %p212 = scmp.le.s32.totalorder 1, %s16
      %p213 = scmp.lt.s32.totalorder %s16, 3
      %p214 = pnand %p212, %p213
      %p215 = pneg %p214
      // Predicated region
      $region37: #{tpu_custom_call.1} parent=5 // pred_check
        _
      $region38: #{tpu_custom_call.1} parent=5 // pred_check_branch
        %217 = sbr.rel (%p214) target = $region40
      $region39: #{tpu_custom_call.1} parent=5 // pred_region
        %s218 = ssub.s32 %s16, 1
        %s219 = smul.u32 8, %s26
        %p220 = scmp.lt.s32.totalorder %s25, 1
        %s221 = scalar_select %p220, %s25, 1
        %p222 = scmp.lt.s32.totalorder %s219, 7
        %s223 = scalar_select %p222, %s219, 7
        %s224 = smul.addr %s221, 8
        %s225 = sadd.s32 %s223, %s224
        %s226 = smul.addr %s225, 4
        %s227 = scalar_lea.vmem %s0, %s226
        %p228 = pneg %p56
        %p229 = pneg %p53
        %p230 = pneg %p77
        %p231 = pneg %p74
        %p232 = pneg %p98
        %p233 = pneg %p95
        %p234 = pneg %p119
        %p235 = pneg %p116
        %p236 = pneg %p140
        %p237 = pneg %p137
        %p238 = pneg %p168
        %p239 = pneg %p165
        %s240 = sand.u32 %s155, 1
        %s241 = scalar_lea.sflag [#allocation4], %s240
        %s242 = sand.u32 %s155, 1
        %s243 = smul.addr %s242, 8
        %s244 = scalar_lea.vmem [#allocation3], %s243
        %s245 = smul.u32 8, %s26
        %p246 = scmp.lt.s32.totalorder %s25, 1
        %s247 = scalar_select %p246, %s25, 1
        %p248 = scmp.lt.s32.totalorder %s245, 7
        %s249 = scalar_select %p248, %s245, 7
        %s250 = smul.addr %s247, 8
        %s251 = sadd.s32 %s249, %s250
        %s252 = smul.addr %s251, 4
        %s253 = scalar_lea.vmem %s0, %s252
        %s254 = smul.u32 8, %s26
        %s255 = smul.u32 8, %s26
        %v256 = vld [vmem:[%s253] sm:$0xff]
        %v257 = vld [vmem:[%s253 + $0x8] sm:$0xff]
        %v258 = vld [vmem:[%s253 + $0x10] sm:$0xff]
        %v259 = vld [vmem:[%s253 + $0x18] sm:$0xff]
        %v260 = vld [vmem:[%s1] sm:$0xff]
        %v261 = vld [vmem:[%s1 + $0x8] sm:$0xff]
        %v262 = vld [vmem:[%s1 + $0x10] sm:$0xff]
        %v263 = vld [vmem:[%s1 + $0x18] sm:$0xff]
        %v264 = vld [vmem:[%s2] sm:$0xff]
        %v265 = vld [vmem:[%s2 + $0x8] sm:$0xff]
        %v266 = vld [vmem:[%s2 + $0x10] sm:$0xff]
        %v267 = vld [vmem:[%s2 + $0x18] sm:$0xff]
        %269 = vset.pattern.permute.xlu0 0
        %270 = vperm.xlu0 %269, %v264
        %v271 = vpop.permute.xlu0 %270
        %274 = vset.pattern.permute.xlu0 0
        %275 = vperm.xlu0 %274, %v265
        %v276 = vpop.permute.xlu0 %275
        %279 = vset.pattern.permute.xlu0 0
        %280 = vperm.xlu0 %279, %v266
        %v281 = vpop.permute.xlu0 %280
        %284 = vset.pattern.permute.xlu0 0
        %285 = vperm.xlu0 %284, %v267
        %v286 = vpop.permute.xlu0 %285
        %292 = vst [vmem:[#allocation1] ss:$2 sm:$0xff] %v256
        %s293 = scalar_lea.vmem [#allocation1], 16
        %294 = vst [vmem:[%s293] ss:$2 sm:$0xff] %v257
        %s295 = scalar_lea.vmem [#allocation1], 32
        %296 = vst [vmem:[%s295] ss:$2 sm:$0xff] %v258
        %s297 = scalar_lea.vmem [#allocation1], 48
        %298 = vst [vmem:[%s297] ss:$2 sm:$0xff] %v259
        %v299 = vld.sshfl [vmem:[#allocation1] sm:$0xff pattern:$0x75316420]
        %v300 = vld.sshfl [vmem:[#allocation1 + $0x8] sm:$0xff pattern:$0x75316420]
        %v301 = vld.sshfl [vmem:[#allocation1 + $0x10] sm:$0xff pattern:$0x75316420]
        %v302 = vld.sshfl [vmem:[#allocation1 + $0x18] sm:$0xff pattern:$0x75316420]
        %v303 = vld.sshfl [vmem:[#allocation1 + $0x20] sm:$0xff pattern:$0x75316420]
        %v304 = vld.sshfl [vmem:[#allocation1 + $0x28] sm:$0xff pattern:$0x75316420]
        %v305 = vld.sshfl [vmem:[#allocation1 + $0x30] sm:$0xff pattern:$0x75316420]
        %v306 = vld.sshfl [vmem:[#allocation1 + $0x38] sm:$0xff pattern:$0x75316420]
        %vm307 = vcmask 31744
        %v309 = vsel %vm307, %v260, 0
        %v312 = vsel %vm307, %v261, 0
        %v315 = vsel %vm307, %v262, 0
        %v318 = vsel %vm307, %v263, 0
        %vm320 = vcmask 1043456
        %v321 = vsel %vm320, %v299, 0
        %v323 = vsel %vm320, %v300, 0
        %v325 = vsel %vm320, %v301, 0
        %v327 = vsel %vm320, %v302, 0
        %v329 = vsel %vm320, %v303, 0
        %v331 = vsel %vm320, %v304, 0
        %v333 = vsel %vm320, %v305, 0
        %v335 = vsel %vm320, %v306, 0
        %337 = vmatpush.msra.mxu0 0.0
        %338 = vmatpush.msra.mxu0 0.0
        %339 = vmatpush.msra.mxu0 0.0
        %340 = vmatpush.msra.mxu0 0.0
        %341 = vmatpush.msra.mxu0 0.0
        %342 = vmatpush.msra.mxu0 0.0
        %343 = vmatpush.msra.mxu0 0.0
        %344 = vmatpush.msra.mxu0 0.0
        %345 = vmatpush.msra.mxu0 0.0
        %346 = vmatpush.msra.mxu0 0.0
        %347 = vmatpush.msra.mxu0 0.0
        %348 = vmatpush.msra.mxu0 0.0
        %349 = vmatpush.msra.mxu0 0.0
        %350 = vmatpush.msra.mxu0 0.0
        %351 = vmatpush.msra.mxu0 0.0
        %352 = vmatpush.msra.mxu0 %v321
        %353 = vmatmul.f32.gmra.mxu0 %v309
        %v354 = vpop.f32.mrf.mxu0
        %v355 = vadd.f32 %v271, %v354
        %356 = vmatmul.f32.gmra.mxu0 %v312
        %v357 = vpop.f32.mrf.mxu0
        %v358 = vadd.f32 %v276, %v357
        %359 = vmatmul.f32.gmra.mxu0 %v315
        %v360 = vpop.f32.mrf.mxu0
        %v361 = vadd.f32 %v281, %v360
        %362 = vmatmul.f32.gmra.mxu0 %v318
        %v363 = vpop.f32.mrf.mxu0
        %v364 = vadd.f32 %v286, %v363
        %365 = vdwg.mxu0
        %366 = vmatpush.msra.mxu0 0.0
        %367 = vmatpush.msra.mxu0 0.0
        %368 = vmatpush.msra.mxu0 0.0
        %369 = vmatpush.msra.mxu0 0.0
        %370 = vmatpush.msra.mxu0 0.0
        %371 = vmatpush.msra.mxu0 0.0
        %372 = vmatpush.msra.mxu0 0.0
        %373 = vmatpush.msra.mxu0 0.0
        %374 = vmatpush.msra.mxu0 0.0
        %375 = vmatpush.msra.mxu0 0.0
        %376 = vmatpush.msra.mxu0 0.0
        %377 = vmatpush.msra.mxu0 0.0
        %378 = vmatpush.msra.mxu0 0.0
        %379 = vmatpush.msra.mxu0 0.0
        %380 = vmatpush.msra.mxu0 0.0
        %381 = vmatpush.msra.mxu0 %v323
        %382 = vmatmul.f32.gmra.mxu0 %v309
        %v383 = vpop.f32.mrf.mxu0
        %v384 = vadd.f32 %v271, %v383
        %385 = vmatmul.f32.gmra.mxu0 %v312
        %v386 = vpop.f32.mrf.mxu0
        %v387 = vadd.f32 %v276, %v386
        %388 = vmatmul.f32.gmra.mxu0 %v315
        %v389 = vpop.f32.mrf.mxu0
        %v390 = vadd.f32 %v281, %v389
        %391 = vmatmul.f32.gmra.mxu0 %v318
        %v392 = vpop.f32.mrf.mxu0
        %v393 = vadd.f32 %v286, %v392
        %394 = vdwg.mxu0
        %395 = vmatpush.msra.mxu0 0.0
        %396 = vmatpush.msra.mxu0 0.0
        %397 = vmatpush.msra.mxu0 0.0
        %398 = vmatpush.msra.mxu0 0.0
        %399 = vmatpush.msra.mxu0 0.0
        %400 = vmatpush.msra.mxu0 0.0
        %401 = vmatpush.msra.mxu0 0.0
        %402 = vmatpush.msra.mxu0 0.0
        %403 = vmatpush.msra.mxu0 0.0
        %404 = vmatpush.msra.mxu0 0.0
        %405 = vmatpush.msra.mxu0 0.0
        %406 = vmatpush.msra.mxu0 0.0
        %407 = vmatpush.msra.mxu0 0.0
        %408 = vmatpush.msra.mxu0 0.0
        %409 = vmatpush.msra.mxu0 0.0
        %410 = vmatpush.msra.mxu0 %v325
        %411 = vmatmul.f32.gmra.mxu0 %v309
        %v412 = vpop.f32.mrf.mxu0
        %v413 = vadd.f32 %v271, %v412
        %414 = vmatmul.f32.gmra.mxu0 %v312
        %v415 = vpop.f32.mrf.mxu0
        %v416 = vadd.f32 %v276, %v415
        %417 = vmatmul.f32.gmra.mxu0 %v315
        %v418 = vpop.f32.mrf.mxu0
        %v419 = vadd.f32 %v281, %v418
        %420 = vmatmul.f32.gmra.mxu0 %v318
        %v421 = vpop.f32.mrf.mxu0
        %v422 = vadd.f32 %v286, %v421
        %423 = vdwg.mxu0
        %424 = vmatpush.msra.mxu0 0.0
        %425 = vmatpush.msra.mxu0 0.0
        %426 = vmatpush.msra.mxu0 0.0
        %427 = vmatpush.msra.mxu0 0.0
        %428 = vmatpush.msra.mxu0 0.0
        %429 = vmatpush.msra.mxu0 0.0
        %430 = vmatpush.msra.mxu0 0.0
        %431 = vmatpush.msra.mxu0 0.0
        %432 = vmatpush.msra.mxu0 0.0
        %433 = vmatpush.msra.mxu0 0.0
        %434 = vmatpush.msra.mxu0 0.0
        %435 = vmatpush.msra.mxu0 0.0
        %436 = vmatpush.msra.mxu0 0.0
        %437 = vmatpush.msra.mxu0 0.0
        %438 = vmatpush.msra.mxu0 0.0
        %439 = vmatpush.msra.mxu0 %v327
        %440 = vmatmul.f32.gmra.mxu0 %v309
        %v441 = vpop.f32.mrf.mxu0
        %v442 = vadd.f32 %v271, %v441
        %443 = vmatmul.f32.gmra.mxu0 %v312
        %v444 = vpop.f32.mrf.mxu0
        %v445 = vadd.f32 %v276, %v444
        %446 = vmatmul.f32.gmra.mxu0 %v315
        %v447 = vpop.f32.mrf.mxu0
        %v448 = vadd.f32 %v281, %v447
        %449 = vmatmul.f32.gmra.mxu0 %v318
        %v450 = vpop.f32.mrf.mxu0
        %v451 = vadd.f32 %v286, %v450
        %452 = vdwg.mxu0
        %453 = vmatpush.msra.mxu0 0.0
        %454 = vmatpush.msra.mxu0 0.0
        %455 = vmatpush.msra.mxu0 0.0
        %456 = vmatpush.msra.mxu0 0.0
        %457 = vmatpush.msra.mxu0 0.0
        %458 = vmatpush.msra.mxu0 0.0
        %459 = vmatpush.msra.mxu0 0.0
        %460 = vmatpush.msra.mxu0 0.0
        %461 = vmatpush.msra.mxu0 0.0
        %462 = vmatpush.msra.mxu0 0.0
        %463 = vmatpush.msra.mxu0 0.0
        %464 = vmatpush.msra.mxu0 0.0
        %465 = vmatpush.msra.mxu0 0.0
        %466 = vmatpush.msra.mxu0 0.0
        %467 = vmatpush.msra.mxu0 0.0
        %468 = vmatpush.msra.mxu0 %v329
        %469 = vmatmul.f32.gmra.mxu0 %v309
        %v470 = vpop.f32.mrf.mxu0
        %v471 = vadd.f32 %v271, %v470
        %472 = vmatmul.f32.gmra.mxu0 %v312
        %v473 = vpop.f32.mrf.mxu0
        %v474 = vadd.f32 %v276, %v473
        %475 = vmatmul.f32.gmra.mxu0 %v315
        %v476 = vpop.f32.mrf.mxu0
        %v477 = vadd.f32 %v281, %v476
        %478 = vmatmul.f32.gmra.mxu0 %v318
        %v479 = vpop.f32.mrf.mxu0
        %v480 = vadd.f32 %v286, %v479
        %481 = vdwg.mxu0
        %482 = vmatpush.msra.mxu0 0.0
        %483 = vmatpush.msra.mxu0 0.0
        %484 = vmatpush.msra.mxu0 0.0
        %485 = vmatpush.msra.mxu0 0.0
        %486 = vmatpush.msra.mxu0 0.0
        %487 = vmatpush.msra.mxu0 0.0
        %488 = vmatpush.msra.mxu0 0.0
        %489 = vmatpush.msra.mxu0 0.0
        %490 = vmatpush.msra.mxu0 0.0
        %491 = vmatpush.msra.mxu0 0.0
        %492 = vmatpush.msra.mxu0 0.0
        %493 = vmatpush.msra.mxu0 0.0
        %494 = vmatpush.msra.mxu0 0.0
        %495 = vmatpush.msra.mxu0 0.0
        %496 = vmatpush.msra.mxu0 0.0
        %497 = vmatpush.msra.mxu0 %v331
        %498 = vmatmul.f32.gmra.mxu0 %v309
        %v499 = vpop.f32.mrf.mxu0
        %v500 = vadd.f32 %v271, %v499
        %501 = vmatmul.f32.gmra.mxu0 %v312
        %v502 = vpop.f32.mrf.mxu0
        %v503 = vadd.f32 %v276, %v502
        %504 = vmatmul.f32.gmra.mxu0 %v315
        %v505 = vpop.f32.mrf.mxu0
        %v506 = vadd.f32 %v281, %v505
        %507 = vmatmul.f32.gmra.mxu0 %v318
        %v508 = vpop.f32.mrf.mxu0
        %v509 = vadd.f32 %v286, %v508
        %510 = vdwg.mxu0
        %511 = vmatpush.msra.mxu0 0.0
        %512 = vmatpush.msra.mxu0 0.0
        %513 = vmatpush.msra.mxu0 0.0
        %514 = vmatpush.msra.mxu0 0.0
        %515 = vmatpush.msra.mxu0 0.0
        %516 = vmatpush.msra.mxu0 0.0
        %517 = vmatpush.msra.mxu0 0.0
        %518 = vmatpush.msra.mxu0 0.0
        %519 = vmatpush.msra.mxu0 0.0
        %520 = vmatpush.msra.mxu0 0.0
        %521 = vmatpush.msra.mxu0 0.0
        %522 = vmatpush.msra.mxu0 0.0
        %523 = vmatpush.msra.mxu0 0.0
        %524 = vmatpush.msra.mxu0 0.0
        %525 = vmatpush.msra.mxu0 0.0
        %526 = vmatpush.msra.mxu0 %v333
        %527 = vmatmul.f32.gmra.mxu0 %v309
        %v528 = vpop.f32.mrf.mxu0
        %v529 = vadd.f32 %v271, %v528
        %530 = vmatmul.f32.gmra.mxu0 %v312
        %v531 = vpop.f32.mrf.mxu0
        %v532 = vadd.f32 %v276, %v531
        %533 = vmatmul.f32.gmra.mxu0 %v315
        %v534 = vpop.f32.mrf.mxu0
        %v535 = vadd.f32 %v281, %v534
        %536 = vmatmul.f32.gmra.mxu0 %v318
        %v537 = vpop.f32.mrf.mxu0
        %v538 = vadd.f32 %v286, %v537
        %539 = vdwg.mxu0
        %540 = vmatpush.msra.mxu0 0.0
        %541 = vmatpush.msra.mxu0 0.0
        %542 = vmatpush.msra.mxu0 0.0
        %543 = vmatpush.msra.mxu0 0.0
        %544 = vmatpush.msra.mxu0 0.0
        %545 = vmatpush.msra.mxu0 0.0
        %546 = vmatpush.msra.mxu0 0.0
        %547 = vmatpush.msra.mxu0 0.0
        %548 = vmatpush.msra.mxu0 0.0
        %549 = vmatpush.msra.mxu0 0.0
        %550 = vmatpush.msra.mxu0 0.0
        %551 = vmatpush.msra.mxu0 0.0
        %552 = vmatpush.msra.mxu0 0.0
        %553 = vmatpush.msra.mxu0 0.0
        %554 = vmatpush.msra.mxu0 0.0
        %555 = vmatpush.msra.mxu0 %v335
        %556 = vmatmul.f32.gmra.mxu0 %v309
        %v557 = vpop.f32.mrf.mxu0
        %v558 = vadd.f32 %v271, %v557
        %559 = vmatmul.f32.gmra.mxu0 %v312
        %v560 = vpop.f32.mrf.mxu0
        %v561 = vadd.f32 %v276, %v560
        %562 = vmatmul.f32.gmra.mxu0 %v315
        %v563 = vpop.f32.mrf.mxu0
        %v564 = vadd.f32 %v281, %v563
        %565 = vmatmul.f32.gmra.mxu0 %v318
        %v566 = vpop.f32.mrf.mxu0
        %v567 = vadd.f32 %v286, %v566
        %568 = vdwg.mxu0
        %v569 = vtanh.pop %v355
        %v570 = vtanh.pop %v384
        %v571 = vtanh.pop %v413
        %v572 = vtanh.pop %v442
        %v573 = vtanh.pop %v471
        %v574 = vtanh.pop %v500
        %v575 = vtanh.pop %v529
        %v576 = vtanh.pop %v558
        %v577 = vtanh.pop %v358
        %v578 = vtanh.pop %v387
        %v579 = vtanh.pop %v416
        %v580 = vtanh.pop %v445
        %v581 = vtanh.pop %v474
        %v582 = vtanh.pop %v503
        %v583 = vtanh.pop %v532
        %v584 = vtanh.pop %v561
        %v585 = vtanh.pop %v361
        %v586 = vtanh.pop %v390
        %v587 = vtanh.pop %v419
        %v588 = vtanh.pop %v448
        %v589 = vtanh.pop %v477
        %v590 = vtanh.pop %v506
        %v591 = vtanh.pop %v535
        %v592 = vtanh.pop %v564
        %v593 = vtanh.pop %v364
        %v594 = vtanh.pop %v393
        %v595 = vtanh.pop %v422
        %v596 = vtanh.pop %v451
        %v597 = vtanh.pop %v480
        %v598 = vtanh.pop %v509
        %v599 = vtanh.pop %v538
        %v600 = vtanh.pop %v567
        %v601 = vld [vmem:[%s3] sm:$0xff]
        %v602 = vld [vmem:[%s3 + $0x8] sm:$0xff]
        %v603 = vld [vmem:[%s3 + $0x10] sm:$0xff]
        %v604 = vld [vmem:[%s3 + $0x18] sm:$0xff]
        %606 = vset.pattern.permute.xlu0 0
        %607 = vperm.xlu0 %606, %v601
        %v608 = vpop.permute.xlu0 %607
        %611 = vset.pattern.permute.xlu0 0
        %612 = vperm.xlu0 %611, %v602
        %v613 = vpop.permute.xlu0 %612
        %616 = vset.pattern.permute.xlu0 0
        %617 = vperm.xlu0 %616, %v603
        %v618 = vpop.permute.xlu0 %617
        %621 = vset.pattern.permute.xlu0 0
        %622 = vperm.xlu0 %621, %v604
        %v623 = vpop.permute.xlu0 %622
        %v625 = vmul.f32 %v569, %v608
        %v626 = vmul.f32 %v570, %v608
        %v627 = vmul.f32 %v571, %v608
        %v628 = vmul.f32 %v572, %v608
        %v629 = vmul.f32 %v573, %v608
        %v630 = vmul.f32 %v574, %v608
        %v631 = vmul.f32 %v575, %v608
        %v632 = vmul.f32 %v576, %v608
        %v633 = vmul.f32 %v577, %v613
        %v634 = vmul.f32 %v578, %v613
        %v635 = vmul.f32 %v579, %v613
        %v636 = vmul.f32 %v580, %v613
        %v637 = vmul.f32 %v581, %v613
        %v638 = vmul.f32 %v582, %v613
        %v639 = vmul.f32 %v583, %v613
        %v640 = vmul.f32 %v584, %v613
        %v641 = vmul.f32 %v585, %v618
        %v642 = vmul.f32 %v586, %v618
        %v643 = vmul.f32 %v587, %v618
        %v644 = vmul.f32 %v588, %v618
        %v645 = vmul.f32 %v589, %v618
        %v646 = vmul.f32 %v590, %v618
        %v647 = vmul.f32 %v591, %v618
        %v648 = vmul.f32 %v592, %v618
        %v649 = vmul.f32 %v593, %v623
        %v650 = vmul.f32 %v594, %v623
        %v651 = vmul.f32 %v595, %v623
        %v652 = vmul.f32 %v596, %v623
        %v653 = vmul.f32 %v597, %v623
        %v654 = vmul.f32 %v598, %v623
        %v655 = vmul.f32 %v599, %v623
        %v656 = vmul.f32 %v600, %v623
        %v657 = vadd.f32 %v625, %v633
        %v658 = vadd.f32 %v657, %v641
        %v659 = vadd.f32 %v658, %v649
        %v660 = vrot.slane %v659, 4
        %v661 = vadd.f32 %v659, %v660
        %v662 = vrot.slane %v661, 2
        %v663 = vadd.f32 %v661, %v662
        %v664 = vrot.slane %v663, 1
        %v665 = vadd.f32 %v663, %v664
        %v666 = vadd.f32 %v626, %v634
        %v667 = vadd.f32 %v666, %v642
        %v668 = vadd.f32 %v667, %v650
        %v669 = vrot.slane %v668, 4
        %v670 = vadd.f32 %v668, %v669
        %v671 = vrot.slane %v670, 2
        %v672 = vadd.f32 %v670, %v671
        %v673 = vrot.slane %v672, 1
        %v674 = vadd.f32 %v672, %v673
        %v675 = vadd.f32 %v627, %v635
        %v676 = vadd.f32 %v675, %v643
        %v677 = vadd.f32 %v676, %v651
        %v678 = vrot.slane %v677, 4
        %v679 = vadd.f32 %v677, %v678
        %v680 = vrot.slane %v679, 2
        %v681 = vadd.f32 %v679, %v680
        %v682 = vrot.slane %v681, 1
        %v683 = vadd.f32 %v681, %v682
        %v684 = vadd.f32 %v628, %v636
        %v685 = vadd.f32 %v684, %v644
        %v686 = vadd.f32 %v685, %v652
        %v687 = vrot.slane %v686, 4
        %v688 = vadd.f32 %v686, %v687
        %v689 = vrot.slane %v688, 2
        %v690 = vadd.f32 %v688, %v689
        %v691 = vrot.slane %v690, 1
        %v692 = vadd.f32 %v690, %v691
        %v693 = vadd.f32 %v629, %v637
        %v694 = vadd.f32 %v693, %v645
        %v695 = vadd.f32 %v694, %v653
        %v696 = vrot.slane %v695, 4
        %v697 = vadd.f32 %v695, %v696
        %v698 = vrot.slane %v697, 2
        %v699 = vadd.f32 %v697, %v698
        %v700 = vrot.slane %v699, 1
        %v701 = vadd.f32 %v699, %v700
        %v702 = vadd.f32 %v630, %v638
        %v703 = vadd.f32 %v702, %v646
        %v704 = vadd.f32 %v703, %v654
        %v705 = vrot.slane %v704, 4
        %v706 = vadd.f32 %v704, %v705
        %v707 = vrot.slane %v706, 2
        %v708 = vadd.f32 %v706, %v707
        %v709 = vrot.slane %v708, 1
        %v710 = vadd.f32 %v708, %v709
        %v711 = vadd.f32 %v631, %v639
        %v712 = vadd.f32 %v711, %v647
        %v713 = vadd.f32 %v712, %v655
        %v714 = vrot.slane %v713, 4
        %v715 = vadd.f32 %v713, %v714
        %v716 = vrot.slane %v715, 2
        %v717 = vadd.f32 %v715, %v716
        %v718 = vrot.slane %v717, 1
        %v719 = vadd.f32 %v717, %v718
        %v720 = vadd.f32 %v632, %v640
        %v721 = vadd.f32 %v720, %v648
        %v722 = vadd.f32 %v721, %v656
        %v723 = vrot.slane %v722, 4
        %v724 = vadd.f32 %v722, %v723
        %v725 = vrot.slane %v724, 2
        %v726 = vadd.f32 %v724, %v725
        %v727 = vrot.slane %v726, 1
        %v728 = vadd.f32 %v726, %v727
        %v729 = vld [vmem:[#allocation2] sm:$0x1]
        %s730 = vtos %v729
        %v731 = vstv %s730
        %v732 = vadd.f32 %v665, %v731
        %v733 = vadd.f32 %v674, %v731
        %v734 = vadd.f32 %v683, %v731
        %v735 = vadd.f32 %v692, %v731
        %v736 = vadd.f32 %v701, %v731
        %v737 = vadd.f32 %v710, %v731
        %v738 = vadd.f32 %v719, %v731
        %v739 = vadd.f32 %v728, %v731
        %v748 = vrot.slane %v733, 7
        %v749 = vrot.slane %v734, 6
        %v750 = vrot.slane %v735, 5
        %v751 = vrot.slane %v736, 4
        %v752 = vrot.slane %v737, 3
        %v753 = vrot.slane %v738, 2
        %v754 = vrot.slane %v739, 1
        %vm755 = vcmask 1040384
        %v756 = vsel %vm755, %v732, %v748
        %vm757 = vcmask 1042434
        %v758 = vsel %vm757, %v749, %v750
        %vm759 = vcmask 1041408
        %v760 = vsel %vm759, %v756, %v758
        %vm761 = vcmask 1044484
        %v762 = vsel %vm761, %v751, %v752
        %vm763 = vcmask 1046534
        %v764 = vsel %vm763, %v753, %v754
        %vm765 = vcmask 1045508
        %v766 = vsel %vm765, %v762, %v764
        %v767 = vsel %vm320, %v760, %v766
        %769 = vst [vmem:[%s244] sm:$0xff] %v767
        %s770 = sand.u32 %s155, 1
        %s771 = scalar_lea.sflag [#allocation4], %s770
        %s772 = sand.u32 %s155, 1
        %s773 = smul.addr %s772, 8
        %s774 = scalar_lea.vmem [#allocation3], %s773
        // Predicated region
        $region41: #{tpu_custom_call.1} parent=39 // pred_check
          %p775 = pneg %p165
        $region42: #{tpu_custom_call.1} parent=39 // pred_check_branch
          %777 = sbr.rel (%p775) target = $region44
        $region43: #{tpu_custom_call.1} parent=39 // pred_region
          %s778 = smul.u32 8, %s26
          %780 = vsyncadd %s771, 0
          %s781 = smul.addr %s25, 8
          %s782 = sadd.s32 %s778, %s781
          %s783 = scalar_lea.hbm %s5, %s782
          %s785 = sshll.u32 %s774, 4
          %s786 = int_to_ptr.vmem [resolvable:$true] %s785
          %s787 = sshll.u32 %s783, 4
          %s788 = int_to_ptr.hbm [resolvable:$true] %s787
          %790 = dma.vmem_to_hbm [thread:$0]  %s786, 128, %s788, %s771
        $region44: #{tpu_custom_call.1} parent=39 // pred_fallthru
          _
      $region40: #{tpu_custom_call.1} parent=5 // pred_fallthru
        _
      %p791 = scmp.le.s32.totalorder 2, %s16
      // Predicated region
      $region45: #{tpu_custom_call.1} parent=5 // pred_check
        %p792 = pneg %p791
      $region46: #{tpu_custom_call.1} parent=5 // pred_check_branch
        %794 = sbr.rel (%p792) target = $region48
      $region47: #{tpu_custom_call.1} parent=5 // pred_region
        %s795 = ssub.s32 %s16, 2
        // Predicated region
        $region49: #{tpu_custom_call.1} parent=47 // pred_check
          %p796 = pneg %p171
        $region50: #{tpu_custom_call.1} parent=47 // pred_check_branch
          %798 = sbr.rel (%p796) target = $region52
        $region51: #{tpu_custom_call.1} parent=47 // pred_region
          %s799 = sand.u32 %s156, 1
          %s800 = scalar_lea.sflag [#allocation4], %s799
          %s801 = sand.u32 %s156, 1
          %s802 = smul.addr %s801, 8
          %s803 = scalar_lea.vmem [#allocation3], %s802
          %805 = dma.done %s800, 128
        $region52: #{tpu_custom_call.1} parent=47 // pred_fallthru
          _
      $region48: #{tpu_custom_call.1} parent=5 // pred_fallthru
        _
    $region6: #{tpu_custom_call.1} parent=1 // loop_footer
      %s20 = sadd.s32 1, %s16
    $region7: #{tpu_custom_call.1} parent=1 // loop_footer_branch
      %15 = sbr.rel target = $region3
    $region8: #{tpu_custom_call.1} parent=1 // loop_exit
      _
    %806 = vsyncpa [#allocation4], 1
    %s807 = scalar_lea.sflag [#allocation4], 1
    %808 = vsyncpa %s807, 1

</llo_original>
